<compile_context>
chip_gen: v7x
topology: tpu7x:2x2x1
jax: 0.10.0
libtpu: 0.0.40
codegen_flags: <defaults>
</compile_context>

<pallas_src>
import functools

import jax
import jax.numpy as jnp
from jax.experimental import pallas as pl
from jax.experimental.pallas import tpu as pltpu


def _round_up(x, m):
    return (x + m - 1) // m * m


# ---------------------------------------------------------------------------
# Kernel
# ---------------------------------------------------------------------------
def encoder_kernel(x_ref, w1_ref, b1_ref, w2_ref, b2_ref, wh_ref, bh_ref,
                   mask_ref, out_ref):
    # x is streamed fp32 from HBM; cast to the MXU compute dtype on the VPU
    # here (cheaper than a separate pad/cast pass over HBM in the wrapper).
    x = x_ref[...].astype(w1_ref.dtype)

    # fc1 (+ folded eval-mode BN1) -> ReLU   (Dropout = identity in eval)
    h1 = jnp.dot(x, w1_ref[...], preferred_element_type=jnp.float32) + b1_ref[...]
    h1 = jnp.maximum(h1, 0.0).astype(w2_ref.dtype)

    # fc2 (+ folded eval-mode BN2) -> ReLU
    h2 = jnp.dot(h1, w2_ref[...], preferred_element_type=jnp.float32) + b2_ref[...]
    h2 = jnp.maximum(h2, 0.0).astype(wh_ref.dtype)

    # Fused heads: columns = [mu_t | std_t | mu_z (dim_z) | std_z (dim_z) | pad]
    y = jnp.dot(h2, wh_ref[...], preferred_element_type=jnp.float32) + bh_ref[...]

    # Numerically stable softplus (torch.nn.Softplus, beta=1) on every column
    # except the mu_z range; column selection uses a precomputed resident mask.
    sp = jnp.maximum(y, 0.0) + jnp.log1p(jnp.exp(-jnp.abs(y)))
    out_ref[...] = jnp.where(mask_ref[...] > 0.0, y, sp)


# ---------------------------------------------------------------------------
# Parameters
# ---------------------------------------------------------------------------
def xavier_uniform(key, fan_out, fan_in):
    # Matches torch.nn.init.xavier_uniform_ on a (out, in) Linear weight,
    # returned already transposed to (in, out) so that y = x @ W + b.
    a = jnp.sqrt(6.0 / (fan_in + fan_out))
    w = jax.random.uniform(key, (fan_out, fan_in), jnp.float32, -a, a)
    return w.T


def make_params(key, Cin, dim_z, N1, N2):
    """Raw PyTorch-equivalent parameters (Linear weights pre-transposed)."""
    ks = jax.random.split(key, 6)
    z = lambda n: jnp.zeros((n,), jnp.float32)
    o = lambda n: jnp.ones((n,), jnp.float32)
    return dict(
        w1=xavier_uniform(ks[0], N1, Cin), b1=z(N1),
        bn1_gamma=o(N1), bn1_beta=z(N1), bn1_mean=z(N1), bn1_var=o(N1),
        w2=xavier_uniform(ks[1], N2, N1), b2=z(N2),
        bn2_gamma=o(N2), bn2_beta=z(N2), bn2_mean=z(N2), bn2_var=o(N2),
        wmt=xavier_uniform(ks[2], 1, N2), bmt=z(1),
        wst=xavier_uniform(ks[3], 1, N2), bst=z(1),
        wmz=xavier_uniform(ks[4], dim_z, N2), bmz=z(dim_z),
        wsz=xavier_uniform(ks[5], dim_z, N2), bsz=z(dim_z),
    )


def prepare_params(raw, *, compute_dtype=jnp.bfloat16, lane=128, eps=1e-5):
    """Fold eval-mode BatchNorm into the Linears, fuse the 4 heads, pad output
    widths to lane multiples, precompute the softplus column mask, and cast
    matmul operands to the compute dtype."""
    s1 = raw["bn1_gamma"] / jnp.sqrt(raw["bn1_var"] + eps)
    t1 = raw["bn1_beta"] - raw["bn1_mean"] * s1
    w1 = raw["w1"] * s1[None, :]
    b1 = raw["b1"] * s1 + t1

    s2 = raw["bn2_gamma"] / jnp.sqrt(raw["bn2_var"] + eps)
    t2 = raw["bn2_beta"] - raw["bn2_mean"] * s2
    w2 = raw["w2"] * s2[None, :]
    b2 = raw["b2"] * s2 + t2

    # Fuse heads: [mu_t, std_t, mu_z..., std_z...]
    wh = jnp.concatenate([raw["wmt"], raw["wst"], raw["wmz"], raw["wsz"]], axis=1)
    bh = jnp.concatenate([raw["bmt"], raw["bst"], raw["bmz"], raw["bsz"]], axis=0)
    dim_z = raw["wmz"].shape[1]

    N1, N2, H = w1.shape[1], w2.shape[1], wh.shape[1]
    N1p, N2p, Hp = (_round_up(n, lane) for n in (N1, N2, H))

    # NOTE: the Cin (K) dim of w1 is deliberately left unpadded so x can be
    # streamed from HBM without an extra wrapper-side pad/cast pass over it.
    w1 = jnp.pad(w1, ((0, 0), (0, N1p - N1)))
    b1 = jnp.pad(b1, (0, N1p - N1))
    w2 = jnp.pad(w2, ((0, N1p - N1), (0, N2p - N2)))
    b2 = jnp.pad(b2, (0, N2p - N2))
    wh = jnp.pad(wh, ((0, N2p - N2), (0, Hp - H)))
    bh = jnp.pad(bh, (0, Hp - H))

    # Resident (1, Hp) column selector: 1.0 -> mu_z columns (identity),
    # 0.0 -> softplus.  Replaces a per-grid-step iota/compare in the kernel.
    col = jnp.arange(Hp)
    mask = ((col >= 2) & (col < 2 + dim_z)).astype(jnp.float32).reshape(1, -1)

    return dict(
        w1=w1.astype(compute_dtype), b1=b1.reshape(1, -1).astype(jnp.float32),
        w2=w2.astype(compute_dtype), b2=b2.reshape(1, -1).astype(jnp.float32),
        wh=wh.astype(compute_dtype), bh=bh.reshape(1, -1).astype(jnp.float32),
        mask=mask,
    )


# ---------------------------------------------------------------------------
# Forward
# ---------------------------------------------------------------------------
@functools.partial(jax.jit, static_argnames=("dim_z", "tile_b", "buffered_weights"))
def _encoder_forward(x, params, *, dim_z, tile_b, buffered_weights):
    B, Cin = x.shape
    w1, b1 = params["w1"], params["b1"]
    w2, b2 = params["w2"], params["b2"]
    wh, bh = params["wh"], params["bh"]
    mask = params["mask"]
    N1p, N2p, Hp = w1.shape[1], w2.shape[1], wh.shape[1]

    w_itemsize = jnp.dtype(w1.dtype).itemsize
    w_bytes = (w1.size + w2.size + wh.size) * w_itemsize
    vec_bytes = (b1.size + b2.size + bh.size + mask.size) * 4

    # Batch tile: >= 2 grid steps when B allows (keeps both v7x TensorCores
    # busy under dimension_semantics=("parallel",)); as large as VMEM allows
    # (fills the 256-wide MXU M dim on v6e/v7x, amortizes per-step overhead).
    TILE_B = min(tile_b, max(8, _round_up(pl.cdiv(B, 2), 8)))

    def vmem_need(tb):
        # Conservative: 2x weights (even when single-buffered), double-buffered
        # x and out tiles, fp32 intermediates (h1, h2, y, sp).
        return (2 * w_bytes + vec_bytes
                + 2 * tb * Cin * 4
                + 2 * tb * Hp * 4
                + tb * (N1p + N2p + 2 * Hp) * 4)

    while TILE_B > 8 and vmem_need(TILE_B) > 40 * 1024 * 1024:
        TILE_B = max(8, _round_up(TILE_B // 2, 8))
    if vmem_need(TILE_B) > 40 * 1024 * 1024:
        # TODO(synk): K-tiled (Cin-split) fallback with fp32 accumulator for
        # very large Cin on v7x (64 MiB VMEM); not needed at these shapes.
        raise ValueError("encoder weights too large for resident-weight kernel")

    grid = (pl.cdiv(B, TILE_B),)

    if buffered_weights:
        # Constant-index operands need no prefetch buffer: single-buffer them.
        resident = lambda arr: pl.BlockSpec(arr.shape, lambda i: (0, 0),
                                            pipeline_mode=pl.Buffered(1))
    else:
        resident = lambda arr: pl.BlockSpec(arr.shape, lambda i: (0, 0))

    in_specs = [
        pl.BlockSpec((TILE_B, Cin), lambda i: (i, 0)),   # x: streamed over batch
        resident(w1), resident(b1),
        resident(w2), resident(b2),
        resident(wh), resident(bh),
        resident(mask),
    ]
    out_specs = pl.BlockSpec((TILE_B, Hp), lambda i: (i, 0))

    cost = pl.CostEstimate(
        flops=2 * B * (Cin * N1p + N1p * N2p + N2p * Hp),
        transcendentals=2 * B * Hp,
        bytes_accessed=B * Cin * 4 + w_bytes + vec_bytes + B * Hp * 4,
    )

    vmem_limit = int(min(max(int(1.5 * vmem_need(TILE_B)), 16 * 1024 * 1024),
                         40 * 1024 * 1024))

    out = pl.pallas_call(
        encoder_kernel,
        out_shape=jax.ShapeDtypeStruct((B, Hp), jnp.float32),
        grid=grid,
        in_specs=in_specs,
        out_specs=out_specs,
        compiler_params=pltpu.CompilerParams(
            dimension_semantics=("parallel",),
            vmem_limit_bytes=vmem_limit,
        ),
        cost_estimate=cost,
    )(x, w1, b1, w2, b2, wh, bh, mask)

    # Slice the fused lane-dense output into the 4 heads (drop lane padding).
    mu_tx = out[:, 0:1]
    std_tx = out[:, 1:2]
    mu_zx = out[:, 2:2 + dim_z]
    std_zx = out[:, 2 + dim_z:2 + 2 * dim_z]
    return mu_tx, std_tx, mu_zx, std_zx


_BUFFERED_WEIGHTS_OK = True  # flipped off if this JAX rejects pipeline_mode


def encoder_forward(x, params, *, dim_z, tile_b=256):
    global _BUFFERED_WEIGHTS_OK
    if _BUFFERED_WEIGHTS_OK:
        try:
            return _encoder_forward(x, params, dim_z=dim_z, tile_b=tile_b,
                                    buffered_weights=True)
        except Exception:
            _BUFFERED_WEIGHTS_OK = False
    return _encoder_forward(x, params, dim_z=dim_z, tile_b=tile_b,
                            buffered_weights=False)


# ---------------------------------------------------------------------------
# Pure-JAX fp32 reference (PyTorch eval-mode semantics)
# ---------------------------------------------------------------------------
def encoder_reference(x, raw, eps=1e-5):
    def bn(h, g, b, m, v):
        return (h - m) / jnp.sqrt(v + eps) * g + b

    sp = lambda z: jnp.maximum(z, 0.0) + jnp.log1p(jnp.exp(-jnp.abs(z)))
    h = jnp.maximum(bn(x @ raw["w1"] + raw["b1"], raw["bn1_gamma"],
                       raw["bn1_beta"], raw["bn1_mean"], raw["bn1_var"]), 0.0)
    h = jnp.maximum(bn(h @ raw["w2"] + raw["b2"], raw["bn2_gamma"],
                       raw["bn2_beta"], raw["bn2_mean"], raw["bn2_var"]), 0.0)
    mu_t = sp(h @ raw["wmt"] + raw["bmt"])
    std_t = sp(h @ raw["wst"] + raw["bst"])
    mu_z = h @ raw["wmz"] + raw["bmz"]
    std_z = sp(h @ raw["wsz"] + raw["bsz"])
    return mu_t, std_t, mu_z, std_z


# ---------------------------------------------------------------------------
# Demo / smoke test
# ---------------------------------------------------------------------------
if __name__ == "__main__":
    # Small shapes consistent with the module: encoder(Cin, dim_z, N1, N2).
    B, Cin, dim_z, N1, N2 = 8, 32, 16, 64, 32

    key = jax.random.PRNGKey(0)
    kx, kp = jax.random.split(key)
    x = jax.random.normal(kx, (B, Cin), jnp.float32)

    raw = make_params(kp, Cin, dim_z, N1, N2)
    params = prepare_params(raw)   # fold BN, fuse heads, pad, cast to bf16

    mu_tx, std_tx, mu_zx, std_zx = encoder_forward(x, params, dim_z=dim_z)
    jax.block_until_ready((mu_tx, std_tx, mu_zx, std_zx))

    assert mu_tx.shape == (B, 1) and std_tx.shape == (B, 1)
    assert mu_zx.shape == (B, dim_z) and std_zx.shape == (B, dim_z)

    # Tolerance check vs the fp32 reference (bf16 matmul operands in-kernel).
    r_mu_t, r_std_t, r_mu_z, r_std_z = encoder_reference(x, raw)
    for got, want in ((mu_tx, r_mu_t), (std_tx, r_std_t),
                      (mu_zx, r_mu_z), (std_zx, r_std_z)):
        assert bool(jnp.all(jnp.isfinite(got)))
        assert float(jnp.max(jnp.abs(got - want))) < 5e-2

    assert bool(jnp.all(std_tx >= 0)) and bool(jnp.all(std_zx >= 0))

    print("KERNEL_OK")
</pallas_src>

<mosaic_0001>
module attributes {stable_mosaic.version = 11 : i64} {
  func.func @encoder_kernel(%arg0: i32, %arg1: memref<8x32xf32, #tpu.memory_space<vmem>>, %arg2: memref<32x128xbf16, #tpu.memory_space<vmem>>, %arg3: memref<1x128xf32, #tpu.memory_space<vmem>>, %arg4: memref<128x128xbf16, #tpu.memory_space<vmem>>, %arg5: memref<1x128xf32, #tpu.memory_space<vmem>>, %arg6: memref<128x128xbf16, #tpu.memory_space<vmem>>, %arg7: memref<1x128xf32, #tpu.memory_space<vmem>>, %arg8: memref<1x128xf32, #tpu.memory_space<vmem>>, %arg9: memref<8x128xf32, #tpu.memory_space<vmem>>) attributes {dimension_semantics = [#tpu.dimension_semantics<parallel>], iteration_bounds = array<i64: 1>, scalar_prefetch = 0 : i64, scratch_operands = 0 : i64, tpu.core_type = #tpu.core_type<tc>, window_params = [{transform_indices = @transform_0, window_bounds = array<i64: 8, 32>}, {pipeline_mode = #tpu.pipeline_mode<synchronous>, transform_indices = @transform_1, window_bounds = array<i64: 32, 128>}, {pipeline_mode = #tpu.pipeline_mode<synchronous>, transform_indices = @transform_2, window_bounds = array<i64: 1, 128>}, {pipeline_mode = #tpu.pipeline_mode<synchronous>, transform_indices = @transform_3, window_bounds = array<i64: 128, 128>}, {pipeline_mode = #tpu.pipeline_mode<synchronous>, transform_indices = @transform_4, window_bounds = array<i64: 1, 128>}, {pipeline_mode = #tpu.pipeline_mode<synchronous>, transform_indices = @transform_5, window_bounds = array<i64: 128, 128>}, {pipeline_mode = #tpu.pipeline_mode<synchronous>, transform_indices = @transform_6, window_bounds = array<i64: 1, 128>}, {pipeline_mode = #tpu.pipeline_mode<synchronous>, transform_indices = @transform_7, window_bounds = array<i64: 1, 128>}, {transform_indices = @transform_8, window_bounds = array<i64: 8, 128>}]} {
    %c0 = arith.constant 0 : index
    %c0_0 = arith.constant 0 : index
    %0 = vector.load %arg1[%c0, %c0_0] : memref<8x32xf32, #tpu.memory_space<vmem>>, vector<8x32xf32>
    %1 = arith.truncf %0 : vector<8x32xf32> to vector<8x32xbf16>
    %c0_1 = arith.constant 0 : index
    %c0_2 = arith.constant 0 : index
    %2 = vector.load %arg2[%c0_1, %c0_2] : memref<32x128xbf16, #tpu.memory_space<vmem>>, vector<32x128xbf16>
    %cst = arith.constant dense<0.000000e+00> : vector<8x128xf32>
    %3 = tpu.matmul %1, %2, %cst {dimension_numbers = #tpu.dot_dimension_numbers<[1], [0], [0], [1], [0, 0, 1, 1], [], []>} : vector<8x32xbf16>, vector<32x128xbf16>, vector<8x128xf32> -> vector<8x128xf32>
    %c0_3 = arith.constant 0 : index
    %c0_4 = arith.constant 0 : index
    %4 = vector.load %arg3[%c0_3, %c0_4] : memref<1x128xf32, #tpu.memory_space<vmem>>, vector<1x128xf32>
    %5 = vector.broadcast %4 : vector<1x128xf32> to vector<8x128xf32>
    %6 = arith.addf %3, %5 : vector<8x128xf32>
    %cst_5 = arith.constant 0.000000e+00 : f32
    %7 = vector.broadcast %cst_5 : f32 to vector<8x128xf32>
    %8 = arith.maximumf %6, %7 : vector<8x128xf32>
    %9 = arith.truncf %8 : vector<8x128xf32> to vector<8x128xbf16>
    %c0_6 = arith.constant 0 : index
    %c0_7 = arith.constant 0 : index
    %10 = vector.load %arg4[%c0_6, %c0_7] : memref<128x128xbf16, #tpu.memory_space<vmem>>, vector<128x128xbf16>
    %cst_8 = arith.constant dense<0.000000e+00> : vector<8x128xf32>
    %11 = tpu.matmul %9, %10, %cst_8 {dimension_numbers = #tpu.dot_dimension_numbers<[1], [0], [0], [1], [0, 0, 1, 1], [], []>} : vector<8x128xbf16>, vector<128x128xbf16>, vector<8x128xf32> -> vector<8x128xf32>
    %c0_9 = arith.constant 0 : index
    %c0_10 = arith.constant 0 : index
    %12 = vector.load %arg5[%c0_9, %c0_10] : memref<1x128xf32, #tpu.memory_space<vmem>>, vector<1x128xf32>
    %13 = vector.broadcast %12 : vector<1x128xf32> to vector<8x128xf32>
    %14 = arith.addf %11, %13 : vector<8x128xf32>
    %cst_11 = arith.constant 0.000000e+00 : f32
    %15 = vector.broadcast %cst_11 : f32 to vector<8x128xf32>
    %16 = arith.maximumf %14, %15 : vector<8x128xf32>
    %17 = arith.truncf %16 : vector<8x128xf32> to vector<8x128xbf16>
    %c0_12 = arith.constant 0 : index
    %c0_13 = arith.constant 0 : index
    %18 = vector.load %arg6[%c0_12, %c0_13] : memref<128x128xbf16, #tpu.memory_space<vmem>>, vector<128x128xbf16>
    %cst_14 = arith.constant dense<0.000000e+00> : vector<8x128xf32>
    %19 = tpu.matmul %17, %18, %cst_14 {dimension_numbers = #tpu.dot_dimension_numbers<[1], [0], [0], [1], [0, 0, 1, 1], [], []>} : vector<8x128xbf16>, vector<128x128xbf16>, vector<8x128xf32> -> vector<8x128xf32>
    %c0_15 = arith.constant 0 : index
    %c0_16 = arith.constant 0 : index
    %20 = vector.load %arg7[%c0_15, %c0_16] : memref<1x128xf32, #tpu.memory_space<vmem>>, vector<1x128xf32>
    %21 = vector.broadcast %20 : vector<1x128xf32> to vector<8x128xf32>
    %22 = arith.addf %19, %21 : vector<8x128xf32>
    %cst_17 = arith.constant 0.000000e+00 : f32
    %23 = vector.broadcast %cst_17 : f32 to vector<8x128xf32>
    %24 = arith.maximumf %22, %23 : vector<8x128xf32>
    %25 = math.absf %22 : vector<8x128xf32>
    %cst_18 = arith.constant 0.000000e+00 : f32
    %26 = vector.broadcast %cst_18 : f32 to vector<8x128xf32>
    %27 = arith.subf %26, %25 : vector<8x128xf32>
    %28 = math.exp %27 : vector<8x128xf32>
    %29 = math.log1p %28 : vector<8x128xf32>
    %30 = arith.addf %24, %29 : vector<8x128xf32>
    %c0_19 = arith.constant 0 : index
    %c0_20 = arith.constant 0 : index
    %31 = vector.load %arg8[%c0_19, %c0_20] : memref<1x128xf32, #tpu.memory_space<vmem>>, vector<1x128xf32>
    %cst_21 = arith.constant 0.000000e+00 : f32
    %32 = vector.broadcast %cst_21 : f32 to vector<1x128xf32>
    %33 = arith.cmpf ogt, %31, %32 : vector<1x128xf32>
    %34 = vector.shape_cast %33 : vector<1x128xi1> to vector<1x128xi1>
    %35 = vector.broadcast %34 : vector<1x128xi1> to vector<8x128xi1>
    %36 = arith.select %35, %22, %30 : vector<8x128xi1>, vector<8x128xf32>
    %c0_22 = arith.constant 0 : index
    %c0_23 = arith.constant 0 : index
    %37 = vector.load %arg9[%c0_22, %c0_23] : memref<8x128xf32, #tpu.memory_space<vmem>>, vector<8x128xf32>
    tpu.vector_store %arg9[%c0_22, %c0_23], %36 {strides = array<i32>} : memref<8x128xf32, #tpu.memory_space<vmem>>, vector<8x128xf32>,
    return
  }
  func.func @transform_0(%arg0: i32) -> (i32, i32) {
    %c0_i32 = arith.constant 0 : i32
    %c0_i32_0 = arith.constant 0 : i32
    return %arg0, %c0_i32 : i32, i32
  }
  func.func @transform_1(%arg0: i32) -> (i32, i32) {
    %c0_i32 = arith.constant 0 : i32
    %c0_i32_0 = arith.constant 0 : i32
    %c0_i32_1 = arith.constant 0 : i32
    return %c0_i32, %c0_i32_0 : i32, i32
  }
  func.func @transform_2(%arg0: i32) -> (i32, i32) {
    %c0_i32 = arith.constant 0 : i32
    %c0_i32_0 = arith.constant 0 : i32
    %c0_i32_1 = arith.constant 0 : i32
    return %c0_i32, %c0_i32_0 : i32, i32
  }
  func.func @transform_3(%arg0: i32) -> (i32, i32) {
    %c0_i32 = arith.constant 0 : i32
    %c0_i32_0 = arith.constant 0 : i32
    %c0_i32_1 = arith.constant 0 : i32
    return %c0_i32, %c0_i32_0 : i32, i32
  }
  func.func @transform_4(%arg0: i32) -> (i32, i32) {
    %c0_i32 = arith.constant 0 : i32
    %c0_i32_0 = arith.constant 0 : i32
    %c0_i32_1 = arith.constant 0 : i32
    return %c0_i32, %c0_i32_0 : i32, i32
  }
  func.func @transform_5(%arg0: i32) -> (i32, i32) {
    %c0_i32 = arith.constant 0 : i32
    %c0_i32_0 = arith.constant 0 : i32
    %c0_i32_1 = arith.constant 0 : i32
    return %c0_i32, %c0_i32_0 : i32, i32
  }
  func.func @transform_6(%arg0: i32) -> (i32, i32) {
    %c0_i32 = arith.constant 0 : i32
    %c0_i32_0 = arith.constant 0 : i32
    %c0_i32_1 = arith.constant 0 : i32
    return %c0_i32, %c0_i32_0 : i32, i32
  }
  func.func @transform_7(%arg0: i32) -> (i32, i32) {
    %c0_i32 = arith.constant 0 : i32
    %c0_i32_0 = arith.constant 0 : i32
    %c0_i32_1 = arith.constant 0 : i32
    return %c0_i32, %c0_i32_0 : i32, i32
  }
  func.func @transform_8(%arg0: i32) -> (i32, i32) {
    %c0_i32 = arith.constant 0 : i32
    %c0_i32_0 = arith.constant 0 : i32
    return %arg0, %c0_i32 : i32, i32
  }
}

module attributes {stable_mosaic.version = 11 : i64} {
  func.func @encoder_kernel(%arg0: i32, %arg1: memref<8x32xf32, #tpu.memory_space<vmem>>, %arg2: memref<32x128xbf16, #tpu.memory_space<vmem>>, %arg3: memref<1x128xf32, #tpu.memory_space<vmem>>, %arg4: memref<128x128xbf16, #tpu.memory_space<vmem>>, %arg5: memref<1x128xf32, #tpu.memory_space<vmem>>, %arg6: memref<128x128xbf16, #tpu.memory_space<vmem>>, %arg7: memref<1x128xf32, #tpu.memory_space<vmem>>, %arg8: memref<1x128xf32, #tpu.memory_space<vmem>>, %arg9: memref<8x128xf32, #tpu.memory_space<vmem>>) attributes {dimension_semantics = [#tpu.dimension_semantics<parallel>], iteration_bounds = array<i64: 1>, scalar_prefetch = 0 : i64, scratch_operands = 0 : i64, tpu.core_type = #tpu.core_type<tc>, window_params = [{transform_indices = @transform_0, window_bounds = array<i64: 8, 32>}, {pipeline_mode = #tpu.pipeline_mode<synchronous>, transform_indices = @transform_1, window_bounds = array<i64: 32, 128>}, {pipeline_mode = #tpu.pipeline_mode<synchronous>, transform_indices = @transform_2, window_bounds = array<i64: 1, 128>}, {pipeline_mode = #tpu.pipeline_mode<synchronous>, transform_indices = @transform_3, window_bounds = array<i64: 128, 128>}, {pipeline_mode = #tpu.pipeline_mode<synchronous>, transform_indices = @transform_4, window_bounds = array<i64: 1, 128>}, {pipeline_mode = #tpu.pipeline_mode<synchronous>, transform_indices = @transform_5, window_bounds = array<i64: 128, 128>}, {pipeline_mode = #tpu.pipeline_mode<synchronous>, transform_indices = @transform_6, window_bounds = array<i64: 1, 128>}, {pipeline_mode = #tpu.pipeline_mode<synchronous>, transform_indices = @transform_7, window_bounds = array<i64: 1, 128>}, {transform_indices = @transform_8, window_bounds = array<i64: 8, 128>}]} {
    %c0 = arith.constant 0 : index
    %c0_0 = arith.constant 0 : index
    %0 = vector.load %arg1[%c0, %c0_0] : memref<8x32xf32, #tpu.memory_space<vmem>>, vector<8x32xf32>
    %1 = arith.truncf %0 : vector<8x32xf32> to vector<8x32xbf16>
    %c0_1 = arith.constant 0 : index
    %c0_2 = arith.constant 0 : index
    %2 = vector.load %arg2[%c0_1, %c0_2] : memref<32x128xbf16, #tpu.memory_space<vmem>>, vector<32x128xbf16>
    %cst = arith.constant dense<0.000000e+00> : vector<8x128xf32>
    %3 = tpu.matmul %1, %2, %cst {dimension_numbers = #tpu.dot_dimension_numbers<[1], [0], [0], [1], [0, 0, 1, 1], [], []>} : vector<8x32xbf16>, vector<32x128xbf16>, vector<8x128xf32> -> vector<8x128xf32>
    %c0_3 = arith.constant 0 : index
    %c0_4 = arith.constant 0 : index
    %4 = vector.load %arg3[%c0_3, %c0_4] : memref<1x128xf32, #tpu.memory_space<vmem>>, vector<1x128xf32>
    %5 = vector.broadcast %4 : vector<1x128xf32> to vector<8x128xf32>
    %6 = arith.addf %3, %5 : vector<8x128xf32>
    %cst_5 = arith.constant 0.000000e+00 : f32
    %7 = vector.broadcast %cst_5 : f32 to vector<8x128xf32>
    %8 = arith.maximumf %6, %7 : vector<8x128xf32>
    %9 = arith.truncf %8 : vector<8x128xf32> to vector<8x128xbf16>
    %c0_6 = arith.constant 0 : index
    %c0_7 = arith.constant 0 : index
    %10 = vector.load %arg4[%c0_6, %c0_7] : memref<128x128xbf16, #tpu.memory_space<vmem>>, vector<128x128xbf16>
    %cst_8 = arith.constant dense<0.000000e+00> : vector<8x128xf32>
    %11 = tpu.matmul %9, %10, %cst_8 {dimension_numbers = #tpu.dot_dimension_numbers<[1], [0], [0], [1], [0, 0, 1, 1], [], []>} : vector<8x128xbf16>, vector<128x128xbf16>, vector<8x128xf32> -> vector<8x128xf32>
    %c0_9 = arith.constant 0 : index
    %c0_10 = arith.constant 0 : index
    %12 = vector.load %arg5[%c0_9, %c0_10] : memref<1x128xf32, #tpu.memory_space<vmem>>, vector<1x128xf32>
    %13 = vector.broadcast %12 : vector<1x128xf32> to vector<8x128xf32>
    %14 = arith.addf %11, %13 : vector<8x128xf32>
    %cst_11 = arith.constant 0.000000e+00 : f32
    %15 = vector.broadcast %cst_11 : f32 to vector<8x128xf32>
    %16 = arith.maximumf %14, %15 : vector<8x128xf32>
    %17 = arith.truncf %16 : vector<8x128xf32> to vector<8x128xbf16>
    %c0_12 = arith.constant 0 : index
    %c0_13 = arith.constant 0 : index
    %18 = vector.load %arg6[%c0_12, %c0_13] : memref<128x128xbf16, #tpu.memory_space<vmem>>, vector<128x128xbf16>
    %cst_14 = arith.constant dense<0.000000e+00> : vector<8x128xf32>
    %19 = tpu.matmul %17, %18, %cst_14 {dimension_numbers = #tpu.dot_dimension_numbers<[1], [0], [0], [1], [0, 0, 1, 1], [], []>} : vector<8x128xbf16>, vector<128x128xbf16>, vector<8x128xf32> -> vector<8x128xf32>
    %c0_15 = arith.constant 0 : index
    %c0_16 = arith.constant 0 : index
    %20 = vector.load %arg7[%c0_15, %c0_16] : memref<1x128xf32, #tpu.memory_space<vmem>>, vector<1x128xf32>
    %21 = vector.broadcast %20 : vector<1x128xf32> to vector<8x128xf32>
    %22 = arith.addf %19, %21 : vector<8x128xf32>
    %cst_17 = arith.constant 0.000000e+00 : f32
    %23 = vector.broadcast %cst_17 : f32 to vector<8x128xf32>
    %24 = arith.maximumf %22, %23 : vector<8x128xf32>
    %25 = math.absf %22 : vector<8x128xf32>
    %cst_18 = arith.constant 0.000000e+00 : f32
    %26 = vector.broadcast %cst_18 : f32 to vector<8x128xf32>
    %27 = arith.subf %26, %25 : vector<8x128xf32>
    %28 = math.exp %27 : vector<8x128xf32>
    %29 = math.log1p %28 : vector<8x128xf32>
    %30 = arith.addf %24, %29 : vector<8x128xf32>
    %c0_19 = arith.constant 0 : index
    %c0_20 = arith.constant 0 : index
    %31 = vector.load %arg8[%c0_19, %c0_20] : memref<1x128xf32, #tpu.memory_space<vmem>>, vector<1x128xf32>
    %cst_21 = arith.constant 0.000000e+00 : f32
    %32 = vector.broadcast %cst_21 : f32 to vector<1x128xf32>
    %33 = arith.cmpf ogt, %31, %32 : vector<1x128xf32>
    %34 = vector.shape_cast %33 : vector<1x128xi1> to vector<1x128xi1>
    %35 = vector.broadcast %34 : vector<1x128xi1> to vector<8x128xi1>
    %36 = arith.select %35, %22, %30 : vector<8x128xi1>, vector<8x128xf32>
    %c0_22 = arith.constant 0 : index
    %c0_23 = arith.constant 0 : index
    %37 = vector.load %arg9[%c0_22, %c0_23] : memref<8x128xf32, #tpu.memory_space<vmem>>, vector<8x128xf32>
    tpu.vector_store %arg9[%c0_22, %c0_23], %36 {strides = array<i32>} : memref<8x128xf32, #tpu.memory_space<vmem>>, vector<8x128xf32>,
    return
  }
  func.func @transform_0(%arg0: i32) -> (i32, i32) {
    %c0_i32 = arith.constant 0 : i32
    %c0_i32_0 = arith.constant 0 : i32
    return %arg0, %c0_i32 : i32, i32
  }
  func.func @transform_1(%arg0: i32) -> (i32, i32) {
    %c0_i32 = arith.constant 0 : i32
    %c0_i32_0 = arith.constant 0 : i32
    %c0_i32_1 = arith.constant 0 : i32
    return %c0_i32, %c0_i32_0 : i32, i32
  }
  func.func @transform_2(%arg0: i32) -> (i32, i32) {
    %c0_i32 = arith.constant 0 : i32
    %c0_i32_0 = arith.constant 0 : i32
    %c0_i32_1 = arith.constant 0 : i32
    return %c0_i32, %c0_i32_0 : i32, i32
  }
  func.func @transform_3(%arg0: i32) -> (i32, i32) {
    %c0_i32 = arith.constant 0 : i32
    %c0_i32_0 = arith.constant 0 : i32
    %c0_i32_1 = arith.constant 0 : i32
    return %c0_i32, %c0_i32_0 : i32, i32
  }
  func.func @transform_4(%arg0: i32) -> (i32, i32) {
    %c0_i32 = arith.constant 0 : i32
    %c0_i32_0 = arith.constant 0 : i32
    %c0_i32_1 = arith.constant 0 : i32
    return %c0_i32, %c0_i32_0 : i32, i32
  }
  func.func @transform_5(%arg0: i32) -> (i32, i32) {
    %c0_i32 = arith.constant 0 : i32
    %c0_i32_0 = arith.constant 0 : i32
    %c0_i32_1 = arith.constant 0 : i32
    return %c0_i32, %c0_i32_0 : i32, i32
  }
  func.func @transform_6(%arg0: i32) -> (i32, i32) {
    %c0_i32 = arith.constant 0 : i32
    %c0_i32_0 = arith.constant 0 : i32
    %c0_i32_1 = arith.constant 0 : i32
    return %c0_i32, %c0_i32_0 : i32, i32
  }
  func.func @transform_7(%arg0: i32) -> (i32, i32) {
    %c0_i32 = arith.constant 0 : i32
    %c0_i32_0 = arith.constant 0 : i32
    %c0_i32_1 = arith.constant 0 : i32
    return %c0_i32, %c0_i32_0 : i32, i32
  }
  func.func @transform_8(%arg0: i32) -> (i32, i32) {
    %c0_i32 = arith.constant 0 : i32
    %c0_i32_0 = arith.constant 0 : i32
    return %arg0, %c0_i32 : i32, i32
  }
}

</mosaic_0001>

<llo_original>
// kernel: _encoder_forward.1
$region0: #{_encoder_forward.1}
  #allocation0 [shape = 'u32[]', space=smem, size = 0x4, offset = 0x4, fixed_abs, tag = 'smem constant byte address 0x4 - core index']
  #allocation1 [shape = 'u32[144,128]{1,0:T(1,128)}', space=vmem, size = 0x12000, scoped, tag = 'internal scratch']
  %s0 = inlined_call_operand.hbm [shape: f32[8,32], index: 0, kind: input, shape index: {}]
  %s1 = inlined_call_operand.vmem [shape: bf16[32,128], index: 1, kind: input, shape index: {}]
  %s2 = inlined_call_operand.vmem [shape: f32[1,128], index: 2, kind: input, shape index: {}]
  %s3 = inlined_call_operand.hbm [shape: bf16[128,128], index: 3, kind: input, shape index: {}]
  %s4 = inlined_call_operand.vmem [shape: f32[1,128], index: 4, kind: input, shape index: {}]
  %s5 = inlined_call_operand.hbm [shape: bf16[128,128], index: 5, kind: input, shape index: {}]
  %s6 = inlined_call_operand.hbm [shape: f32[1,128], index: 6, kind: input, shape index: {}]
  %s7 = inlined_call_operand.hbm [shape: f32[1,128], index: 7, kind: input, shape index: {}]
  %s8 = inlined_call_operand.vmem [shape: f32[8,128], index: 8, kind: output, shape index: {}]
  %s9 = sld [smem:[#allocation0]]
  $region62: #{_encoder_forward.1} parent=0
    _
  %s11 = ssub.s32 1, %s9
  %s12 = scalar_select 0, %s11, %s9
  $region1: #{_encoder_forward.1} parent=0
    #allocation2 [shape = 'u8[4096]{0}', space=vmem, size = 0x1000, scoped, tag = 'input window, operand 0, single buffered']
    #allocation3 [shape = 's32[1]{0}', space=sflag, size = 0x4, scoped, tag = 'scoped memory for _encoder_forward.1']
    #allocation4 [shape = 'u8[32768]{0}', space=vmem, size = 0x8000, scoped, tag = 'input window, operand 3, single buffered']
    #allocation5 [shape = 's32[1]{0}', space=sflag, size = 0x4, scoped, tag = 'scoped memory for _encoder_forward.1']
    #allocation6 [shape = 'u8[32768]{0}', space=vmem, size = 0x8000, scoped, tag = 'input window, operand 5, single buffered']
    #allocation7 [shape = 'u8[512]{0}', space=vmem, size = 0x400, scoped, tag = 'input window, operand 6, single buffered']
    #allocation8 [shape = 's32[1]{0}', space=sflag, size = 0x4, scoped, tag = 'scoped memory for _encoder_forward.1']
    #allocation9 [shape = 'u8[512]{0}', space=vmem, size = 0x400, scoped, tag = 'input window, operand 7, single buffered']
    %13 = vsyncpa [#allocation3], 0
    %14 = vsyncpa [#allocation5], 0
    %15 = vsyncpa [#allocation8], 0
    // Predicated region
    $region2: #{_encoder_forward.1} parent=1 // pred_check
      _
    $region3: #{_encoder_forward.1} parent=1 // pred_check_branch
      %17 = sbr.rel (0) target = $region5
    $region4: #{_encoder_forward.1} parent=1 // pred_region
      %s19 = ssub.s32 128, 128
      %20 = vsyncadd [#allocation3], %s19
      %s22 = sshll.u32 [#allocation2], 4
      %s23 = int_to_ptr.vmem [resolvable:$true] %s22
      %25 = dma.hbm_to_vmem [thread:$0]  %s0, 128, %s23, [#allocation3]
    $region5: #{_encoder_forward.1} parent=1 // pred_fallthru
      _
    // Predicated region
    $region6: #{_encoder_forward.1} parent=1 // pred_check
      _
    $region7: #{_encoder_forward.1} parent=1 // pred_check_branch
      %27 = sbr.rel (0) target = $region9
    $region8: #{_encoder_forward.1} parent=1 // pred_region
      _
    $region9: #{_encoder_forward.1} parent=1 // pred_fallthru
      _
    // Predicated region
    $region10: #{_encoder_forward.1} parent=1 // pred_check
      _
    $region11: #{_encoder_forward.1} parent=1 // pred_check_branch
      %29 = sbr.rel (0) target = $region13
    $region12: #{_encoder_forward.1} parent=1 // pred_region
      _
    $region13: #{_encoder_forward.1} parent=1 // pred_fallthru
      _
    // Predicated region
    $region14: #{_encoder_forward.1} parent=1 // pred_check
      _
    $region15: #{_encoder_forward.1} parent=1 // pred_check_branch
      %31 = sbr.rel (0) target = $region17
    $region16: #{_encoder_forward.1} parent=1 // pred_region
      %s33 = ssub.s32 1024, 1024
      %34 = vsyncadd [#allocation5], %s33
      %s35 = sshll.u32 [#allocation4], 4
      %s36 = int_to_ptr.vmem [resolvable:$true] %s35
      %41 = dma.hbm_to_vmem [thread:$0]  %s3, 1024, %s36, [#allocation5], 64, 64, 4
    $region17: #{_encoder_forward.1} parent=1 // pred_fallthru
      _
    // Predicated region
    $region18: #{_encoder_forward.1} parent=1 // pred_check
      _
    $region19: #{_encoder_forward.1} parent=1 // pred_check_branch
      %43 = sbr.rel (0) target = $region21
    $region20: #{_encoder_forward.1} parent=1 // pred_region
      _
    $region21: #{_encoder_forward.1} parent=1 // pred_fallthru
      _
    // Predicated region
    $region22: #{_encoder_forward.1} parent=1 // pred_check
      _
    $region23: #{_encoder_forward.1} parent=1 // pred_check_branch
      %45 = sbr.rel (0) target = $region25
    $region24: #{_encoder_forward.1} parent=1 // pred_region
      %s47 = ssub.s32 1024, 1024
      %48 = vsyncadd [#allocation5], %s47
      %s49 = sshll.u32 [#allocation6], 4
      %s50 = int_to_ptr.vmem [resolvable:$true] %s49
      %55 = dma.hbm_to_vmem [thread:$0]  %s5, 1024, %s50, [#allocation5], 64, 64, 4
    $region25: #{_encoder_forward.1} parent=1 // pred_fallthru
      _
    // Predicated region
    $region26: #{_encoder_forward.1} parent=1 // pred_check
      _
    $region27: #{_encoder_forward.1} parent=1 // pred_check_branch
      %57 = sbr.rel (0) target = $region29
    $region28: #{_encoder_forward.1} parent=1 // pred_region
      %s59 = ssub.s32 16, 16
      %60 = vsyncadd [#allocation8], %s59
      %s62 = sshll.u32 [#allocation7], 4
      %s63 = int_to_ptr.vmem [resolvable:$true] %s62
      %65 = dma.hbm_to_vmem [thread:$0]  %s6, 16, %s63, [#allocation8]
    $region29: #{_encoder_forward.1} parent=1 // pred_fallthru
      _
    // Predicated region
    $region30: #{_encoder_forward.1} parent=1 // pred_check
      _
    $region31: #{_encoder_forward.1} parent=1 // pred_check_branch
      %67 = sbr.rel (0) target = $region33
    $region32: #{_encoder_forward.1} parent=1 // pred_region
      %s69 = ssub.s32 16, 16
      %70 = vsyncadd [#allocation8], %s69
      %s72 = sshll.u32 [#allocation9], 4
      %s73 = int_to_ptr.vmem [resolvable:$true] %s72
      %75 = dma.hbm_to_vmem [thread:$0]  %s7, 16, %s73, [#allocation8]
    $region33: #{_encoder_forward.1} parent=1 // pred_fallthru
      _
    // Predicated region
    $region34: #{_encoder_forward.1} parent=1 // pred_check
      _
    $region35: #{_encoder_forward.1} parent=1 // pred_check_branch
      %77 = sbr.rel (0) target = $region37
    $region36: #{_encoder_forward.1} parent=1 // pred_region
      %78 = dma.done [#allocation3], 128
    $region37: #{_encoder_forward.1} parent=1 // pred_fallthru
      _
    // Predicated region
    $region38: #{_encoder_forward.1} parent=1 // pred_check
      _
    $region39: #{_encoder_forward.1} parent=1 // pred_check_branch
      %80 = sbr.rel (0) target = $region41
    $region40: #{_encoder_forward.1} parent=1 // pred_region
      %81 = dma.done [#allocation5], 1024
    $region41: #{_encoder_forward.1} parent=1 // pred_fallthru
      _
    // Predicated region
    $region42: #{_encoder_forward.1} parent=1 // pred_check
      _
    $region43: #{_encoder_forward.1} parent=1 // pred_check_branch
      %83 = sbr.rel (0) target = $region45
    $region44: #{_encoder_forward.1} parent=1 // pred_region
      %84 = dma.done [#allocation5], 1024
    $region45: #{_encoder_forward.1} parent=1 // pred_fallthru
      _
    // Predicated region
    $region46: #{_encoder_forward.1} parent=1 // pred_check
      _
    $region47: #{_encoder_forward.1} parent=1 // pred_check_branch
      %86 = sbr.rel (0) target = $region49
    $region48: #{_encoder_forward.1} parent=1 // pred_region
      %87 = dma.done [#allocation8], 16
    $region49: #{_encoder_forward.1} parent=1 // pred_fallthru
      _
    // Predicated region
    $region50: #{_encoder_forward.1} parent=1 // pred_check
      _
    $region51: #{_encoder_forward.1} parent=1 // pred_check_branch
      %89 = sbr.rel (0) target = $region53
    $region52: #{_encoder_forward.1} parent=1 // pred_region
      %90 = dma.done [#allocation8], 16
    $region53: #{_encoder_forward.1} parent=1 // pred_fallthru
      _
    %v92 = vld [vmem:[#allocation2] sm:$0xff]
    %v93 = vpack.c.bf16 %v92, %v92
    %v94 = vld [vmem:[%s1] sm:$0xf]
    %v95 = vld [vmem:[%s1 + $0x4] sm:$0xf]
    %v96 = vld [vmem:[%s1 + $0x8] sm:$0xf]
    %v97 = vld [vmem:[%s1 + $0xc] sm:$0xf]
    %v98 = vld [vmem:[%s2] sm:$0x1]
    %v100 = vlaneseq
    %v101 = vshrl.u32 %v100, 7
    %v102 = vsub.s32 0, %v101
    %v103 = vrot.slane %v98, %v102
    %v109 = vunpack.c.l.b16 %v94
    %v110 = vunpack.c.l.b16 %v95
    %v111 = vunpack.c.l.b16 %v96
    %v112 = vunpack.c.l.b16 %v97
    %v113 = vpack.c.b16 %v110, %v109
    %v114 = vpack.c.b16 %v112, %v111
    %vm117 = vcmask 261120
    %v119 = vsel %vm117, %v93, 0
    %121 = vmatprep.subr.bf16.mxu0 0
    %122 = vmatpush1.bf16.msra.mxu0 %v113
    %123 = vmatprep.subr.bf16.mxu0 0
    %124 = vmatpush1.bf16.msra.mxu0 %v114
    %125 = vmatprep.subr.bf16.mxu0 0
    %126 = vmatpush1.bf16.msra.mxu0 0
    %127 = vmatprep.subr.bf16.mxu0 0
    %128 = vmatpush1.bf16.msra.mxu0 0
    %129 = vmatprep.subr.bf16.mxu0 0
    %130 = vmatpush1.bf16.msra.mxu0 0
    %131 = vmatprep.subr.bf16.mxu0 0
    %132 = vmatpush1.bf16.msra.mxu0 0
    %133 = vmatprep.subr.bf16.mxu0 0
    %134 = vmatpush1.bf16.msra.mxu0 0
    %135 = vmatprep.subr.bf16.mxu0 0
    %136 = vmatpush1.bf16.msra.mxu0 0
    %137 = vmatprep.subr.bf16.mxu0 0
    %138 = vmatpush1.bf16.msra.mxu0 0
    %139 = vmatprep.subr.bf16.mxu0 0
    %140 = vmatpush1.bf16.msra.mxu0 0
    %141 = vmatprep.subr.bf16.mxu0 0
    %142 = vmatpush1.bf16.msra.mxu0 0
    %143 = vmatprep.subr.bf16.mxu0 0
    %144 = vmatpush1.bf16.msra.mxu0 0
    %145 = vmatprep.subr.bf16.mxu0 0
    %146 = vmatpush1.bf16.msra.mxu0 0
    %147 = vmatprep.subr.bf16.mxu0 0
    %148 = vmatpush1.bf16.msra.mxu0 0
    %149 = vmatprep.subr.bf16.mxu0 0
    %150 = vmatpush1.bf16.msra.mxu0 0
    %151 = vmatprep.subr.bf16.mxu0 0
    %152 = vmatpush1.bf16.msra.mxu0 0
    %153 = vmatprep.mubr.bf16.mxu0 0
    %154 = vmatmul.mubr.bf16.gmra.mrb[0].mxu0 %v119
    %v155 = vpop.f32.mrb[0].mxu0
    %v156 = vadd.f32 %v103, %v155
    %v157 = vpop.f32.mrb[0].mxu0
    %v158 = vpop.f32.mrb[0].mxu0
    %v159 = vpop.f32.mrb[0].mxu0
    %160 = vdwg.mxu0
    %v161 = vmax.f32 %v156, 0.0
    %v162 = vpack.c.bf16 %v161, %v161
    %v163 = vld [vmem:[#allocation4] sm:$0xf]
    %v164 = vld [vmem:[#allocation4 + $0x4] sm:$0xf]
    %v165 = vld [vmem:[#allocation4 + $0x8] sm:$0xf]
    %v166 = vld [vmem:[#allocation4 + $0xc] sm:$0xf]
    %v167 = vld [vmem:[#allocation4 + $0x10] sm:$0xf]
    %v168 = vld [vmem:[#allocation4 + $0x14] sm:$0xf]
    %v169 = vld [vmem:[#allocation4 + $0x18] sm:$0xf]
    %v170 = vld [vmem:[#allocation4 + $0x1c] sm:$0xf]
    %v171 = vld [vmem:[#allocation4 + $0x20] sm:$0xf]
    %v172 = vld [vmem:[#allocation4 + $0x24] sm:$0xf]
    %v173 = vld [vmem:[#allocation4 + $0x28] sm:$0xf]
    %v174 = vld [vmem:[#allocation4 + $0x2c] sm:$0xf]
    %v175 = vld [vmem:[#allocation4 + $0x30] sm:$0xf]
    %v176 = vld [vmem:[#allocation4 + $0x34] sm:$0xf]
    %v177 = vld [vmem:[#allocation4 + $0x38] sm:$0xf]
    %v178 = vld [vmem:[#allocation4 + $0x3c] sm:$0xf]
    %v179 = vld [vmem:[%s4] sm:$0x1]
    %v181 = vlaneseq
    %v182 = vshrl.u32 %v181, 7
    %v183 = vsub.s32 0, %v182
    %v184 = vrot.slane %v179, %v183
    %v202 = vunpack.c.l.b16 %v163
    %v203 = vunpack.c.l.b16 %v164
    %v204 = vunpack.c.l.b16 %v165
    %v205 = vunpack.c.l.b16 %v166
    %v206 = vunpack.c.l.b16 %v167
    %v207 = vunpack.c.l.b16 %v168
    %v208 = vunpack.c.l.b16 %v169
    %v209 = vunpack.c.l.b16 %v170
    %v210 = vunpack.c.l.b16 %v171
    %v211 = vunpack.c.l.b16 %v172
    %v212 = vunpack.c.l.b16 %v173
    %v213 = vunpack.c.l.b16 %v174
    %v214 = vunpack.c.l.b16 %v175
    %v215 = vunpack.c.l.b16 %v176
    %v216 = vunpack.c.l.b16 %v177
    %v217 = vunpack.c.l.b16 %v178
    %v218 = vpack.c.b16 %v203, %v202
    %v219 = vpack.c.b16 %v205, %v204
    %v220 = vpack.c.b16 %v207, %v206
    %v221 = vpack.c.b16 %v209, %v208
    %v222 = vpack.c.b16 %v211, %v210
    %v223 = vpack.c.b16 %v213, %v212
    %v224 = vpack.c.b16 %v215, %v214
    %v225 = vpack.c.b16 %v217, %v216
    %234 = vmatprep.subr.bf16.mxu0 0
    %235 = vmatpush1.bf16.msra.mxu0 %v218
    %236 = vmatprep.subr.bf16.mxu0 0
    %237 = vmatpush1.bf16.msra.mxu0 %v219
    %238 = vmatprep.subr.bf16.mxu0 0
    %239 = vmatpush1.bf16.msra.mxu0 %v220
    %240 = vmatprep.subr.bf16.mxu0 0
    %241 = vmatpush1.bf16.msra.mxu0 %v221
    %242 = vmatprep.subr.bf16.mxu0 0
    %243 = vmatpush1.bf16.msra.mxu0 %v222
    %244 = vmatprep.subr.bf16.mxu0 0
    %245 = vmatpush1.bf16.msra.mxu0 %v223
    %246 = vmatprep.subr.bf16.mxu0 0
    %247 = vmatpush1.bf16.msra.mxu0 %v224
    %248 = vmatprep.subr.bf16.mxu0 0
    %249 = vmatpush1.bf16.msra.mxu0 %v225
    %250 = vmatprep.subr.bf16.mxu0 0
    %251 = vmatpush1.bf16.msra.mxu0 0
    %252 = vmatprep.subr.bf16.mxu0 0
    %253 = vmatpush1.bf16.msra.mxu0 0
    %254 = vmatprep.subr.bf16.mxu0 0
    %255 = vmatpush1.bf16.msra.mxu0 0
    %256 = vmatprep.subr.bf16.mxu0 0
    %257 = vmatpush1.bf16.msra.mxu0 0
    %258 = vmatprep.subr.bf16.mxu0 0
    %259 = vmatpush1.bf16.msra.mxu0 0
    %260 = vmatprep.subr.bf16.mxu0 0
    %261 = vmatpush1.bf16.msra.mxu0 0
    %262 = vmatprep.subr.bf16.mxu0 0
    %263 = vmatpush1.bf16.msra.mxu0 0
    %264 = vmatprep.subr.bf16.mxu0 0
    %265 = vmatpush1.bf16.msra.mxu0 0
    %266 = vmatprep.mubr.bf16.mxu0 0
    %267 = vmatmul.mubr.bf16.gmra.mrb[0].mxu0 %v162
    %v268 = vpop.f32.mrb[0].mxu0
    %v269 = vadd.f32 %v184, %v268
    %v270 = vpop.f32.mrb[0].mxu0
    %v271 = vpop.f32.mrb[0].mxu0
    %v272 = vpop.f32.mrb[0].mxu0
    %273 = vdwg.mxu0
    %v274 = vmax.f32 %v269, 0.0
    %v275 = vpack.c.bf16 %v274, %v274
    %v276 = vld [vmem:[#allocation6] sm:$0xf]
    %v277 = vld [vmem:[#allocation6 + $0x4] sm:$0xf]
    %v278 = vld [vmem:[#allocation6 + $0x8] sm:$0xf]
    %v279 = vld [vmem:[#allocation6 + $0xc] sm:$0xf]
    %v280 = vld [vmem:[#allocation6 + $0x10] sm:$0xf]
    %v281 = vld [vmem:[#allocation6 + $0x14] sm:$0xf]
    %v282 = vld [vmem:[#allocation6 + $0x18] sm:$0xf]
    %v283 = vld [vmem:[#allocation6 + $0x1c] sm:$0xf]
    %v284 = vld [vmem:[#allocation6 + $0x20] sm:$0xf]
    %v285 = vld [vmem:[#allocation6 + $0x24] sm:$0xf]
    %v286 = vld [vmem:[#allocation6 + $0x28] sm:$0xf]
    %v287 = vld [vmem:[#allocation6 + $0x2c] sm:$0xf]
    %v288 = vld [vmem:[#allocation6 + $0x30] sm:$0xf]
    %v289 = vld [vmem:[#allocation6 + $0x34] sm:$0xf]
    %v290 = vld [vmem:[#allocation6 + $0x38] sm:$0xf]
    %v291 = vld [vmem:[#allocation6 + $0x3c] sm:$0xf]
    %v292 = vld [vmem:[#allocation7] sm:$0x1]
    %v294 = vlaneseq
    %v295 = vshrl.u32 %v294, 7
    %v296 = vsub.s32 0, %v295
    %v297 = vrot.slane %v292, %v296
    %v315 = vunpack.c.l.b16 %v276
    %v316 = vunpack.c.l.b16 %v277
    %v317 = vunpack.c.l.b16 %v278
    %v318 = vunpack.c.l.b16 %v279
    %v319 = vunpack.c.l.b16 %v280
    %v320 = vunpack.c.l.b16 %v281
    %v321 = vunpack.c.l.b16 %v282
    %v322 = vunpack.c.l.b16 %v283
    %v323 = vunpack.c.l.b16 %v284
    %v324 = vunpack.c.l.b16 %v285
    %v325 = vunpack.c.l.b16 %v286
    %v326 = vunpack.c.l.b16 %v287
    %v327 = vunpack.c.l.b16 %v288
    %v328 = vunpack.c.l.b16 %v289
    %v329 = vunpack.c.l.b16 %v290
    %v330 = vunpack.c.l.b16 %v291
    %v331 = vpack.c.b16 %v316, %v315
    %v332 = vpack.c.b16 %v318, %v317
    %v333 = vpack.c.b16 %v320, %v319
    %v334 = vpack.c.b16 %v322, %v321
    %v335 = vpack.c.b16 %v324, %v323
    %v336 = vpack.c.b16 %v326, %v325
    %v337 = vpack.c.b16 %v328, %v327
    %v338 = vpack.c.b16 %v330, %v329
    %347 = vmatprep.subr.bf16.mxu0 0
    %348 = vmatpush1.bf16.msra.mxu0 %v331
    %349 = vmatprep.subr.bf16.mxu0 0
    %350 = vmatpush1.bf16.msra.mxu0 %v332
    %351 = vmatprep.subr.bf16.mxu0 0
    %352 = vmatpush1.bf16.msra.mxu0 %v333
    %353 = vmatprep.subr.bf16.mxu0 0
    %354 = vmatpush1.bf16.msra.mxu0 %v334
    %355 = vmatprep.subr.bf16.mxu0 0
    %356 = vmatpush1.bf16.msra.mxu0 %v335
    %357 = vmatprep.subr.bf16.mxu0 0
    %358 = vmatpush1.bf16.msra.mxu0 %v336
    %359 = vmatprep.subr.bf16.mxu0 0
    %360 = vmatpush1.bf16.msra.mxu0 %v337
    %361 = vmatprep.subr.bf16.mxu0 0
    %362 = vmatpush1.bf16.msra.mxu0 %v338
    %363 = vmatprep.subr.bf16.mxu0 0
    %364 = vmatpush1.bf16.msra.mxu0 0
    %365 = vmatprep.subr.bf16.mxu0 0
    %366 = vmatpush1.bf16.msra.mxu0 0
    %367 = vmatprep.subr.bf16.mxu0 0
    %368 = vmatpush1.bf16.msra.mxu0 0
    %369 = vmatprep.subr.bf16.mxu0 0
    %370 = vmatpush1.bf16.msra.mxu0 0
    %371 = vmatprep.subr.bf16.mxu0 0
    %372 = vmatpush1.bf16.msra.mxu0 0
    %373 = vmatprep.subr.bf16.mxu0 0
    %374 = vmatpush1.bf16.msra.mxu0 0
    %375 = vmatprep.subr.bf16.mxu0 0
    %376 = vmatpush1.bf16.msra.mxu0 0
    %377 = vmatprep.subr.bf16.mxu0 0
    %378 = vmatpush1.bf16.msra.mxu0 0
    %379 = vmatprep.mubr.bf16.mxu0 0
    %380 = vmatmul.mubr.bf16.gmra.mrb[0].mxu0 %v275
    %v381 = vpop.f32.mrb[0].mxu0
    %v382 = vadd.f32 %v297, %v381
    %v383 = vpop.f32.mrb[0].mxu0
    %v384 = vpop.f32.mrb[0].mxu0
    %v385 = vpop.f32.mrb[0].mxu0
    %386 = vdwg.mxu0
    %v387 = vmax.f32 %v382, 0.0
    %v388 = vand.u32 2147483647, %v382
    %v389 = vsub.f32 0.0, %v388
    %v390 = vmul.f32 %v389, 1.442695
    %v391 = vpow.pop %v390
    %v392 = vadd.f32 %v391, 1.0
    %v393 = vlog2.pop %v392
    %v394 = vmul.f32 %v393, 0.6931472
    %v395 = vmul.f32 -0.5, %v391
    %v396 = vadd.f32 %v395, 1.0
    %v397 = vmul.f32 %v396, %v391
    %v398 = vand.u32 2147483647, %v391
    %vm399 = vcmp.lt.f32.partialorder %v398, 0.0004427343
    %v400 = vsel %vm399, %v397, %v394
    %v401 = vadd.f32 %v387, %v400
    %v402 = vld [vmem:[#allocation9] sm:$0x1]
    %vm403 = vcmp.gt.f32.partialorder %v402, 0.0
    %v404 = vsel %vm403, 1, 0
    %v405 = vlaneseq
    %v406 = vshrl.u32 %v405, 7
    %v407 = vsub.s32 0, %v406
    %v408 = vrot.slane %v404, %v407
    %vm409 = vcmp.eq.s32.totalorder %v408, 1
    %v410 = vsel %vm409, %v382, %v401
    %411 = vst [vmem:[%s8] sm:$0xff] %v410
    // Predicated region
    $region54: #{_encoder_forward.1} parent=1 // pred_check
      _
    $region55: #{_encoder_forward.1} parent=1 // pred_check_branch
      %413 = sbr.rel (0) target = $region57
    $region56: #{_encoder_forward.1} parent=1 // pred_region
      _
    $region57: #{_encoder_forward.1} parent=1 // pred_fallthru
      _
    // Predicated region
    $region58: #{_encoder_forward.1} parent=1 // pred_check
      _
    $region59: #{_encoder_forward.1} parent=1 // pred_check_branch
      %415 = sbr.rel (0) target = $region61
    $region60: #{_encoder_forward.1} parent=1 // pred_region
      _
    $region61: #{_encoder_forward.1} parent=1 // pred_fallthru
      _
    %416 = vsyncpa [#allocation3], 1
    %417 = vsyncpa [#allocation5], 1
    %418 = vsyncpa [#allocation8], 1

// kernel: _encoder_forward.1
$region0: #{_encoder_forward.1}
  #allocation0 [shape = 'u32[]', space=smem, size = 0x4, offset = 0x4, fixed_abs, tag = 'smem constant byte address 0x4 - core index']
  #allocation1 [shape = 'u32[144,128]{1,0:T(1,128)}', space=vmem, size = 0x12000, scoped, tag = 'internal scratch']
  %s0 = inlined_call_operand.hbm [shape: f32[8,32], index: 0, kind: input, shape index: {}]
  %s1 = inlined_call_operand.vmem [shape: bf16[32,128], index: 1, kind: input, shape index: {}]
  %s2 = inlined_call_operand.vmem [shape: f32[1,128], index: 2, kind: input, shape index: {}]
  %s3 = inlined_call_operand.hbm [shape: bf16[128,128], index: 3, kind: input, shape index: {}]
  %s4 = inlined_call_operand.vmem [shape: f32[1,128], index: 4, kind: input, shape index: {}]
  %s5 = inlined_call_operand.hbm [shape: bf16[128,128], index: 5, kind: input, shape index: {}]
  %s6 = inlined_call_operand.hbm [shape: f32[1,128], index: 6, kind: input, shape index: {}]
  %s7 = inlined_call_operand.hbm [shape: f32[1,128], index: 7, kind: input, shape index: {}]
  %s8 = inlined_call_operand.vmem [shape: f32[8,128], index: 8, kind: output, shape index: {}]
  %s9 = sld [smem:[#allocation0]]
  $region62: #{_encoder_forward.1} parent=0
    _
  %s11 = ssub.s32 1, %s9
  %s12 = scalar_select 0, %s11, %s9
  $region1: #{_encoder_forward.1} parent=0
    #allocation2 [shape = 'u8[4096]{0}', space=vmem, size = 0x1000, scoped, tag = 'input window, operand 0, single buffered']
    #allocation3 [shape = 's32[1]{0}', space=sflag, size = 0x4, scoped, tag = 'scoped memory for _encoder_forward.1']
    #allocation4 [shape = 'u8[32768]{0}', space=vmem, size = 0x8000, scoped, tag = 'input window, operand 3, single buffered']
    #allocation5 [shape = 's32[1]{0}', space=sflag, size = 0x4, scoped, tag = 'scoped memory for _encoder_forward.1']
    #allocation6 [shape = 'u8[32768]{0}', space=vmem, size = 0x8000, scoped, tag = 'input window, operand 5, single buffered']
    #allocation7 [shape = 'u8[512]{0}', space=vmem, size = 0x400, scoped, tag = 'input window, operand 6, single buffered']
    #allocation8 [shape = 's32[1]{0}', space=sflag, size = 0x4, scoped, tag = 'scoped memory for _encoder_forward.1']
    #allocation9 [shape = 'u8[512]{0}', space=vmem, size = 0x400, scoped, tag = 'input window, operand 7, single buffered']
    %13 = vsyncpa [#allocation3], 0
    %14 = vsyncpa [#allocation5], 0
    %15 = vsyncpa [#allocation8], 0
    // Predicated region
    $region2: #{_encoder_forward.1} parent=1 // pred_check
      _
    $region3: #{_encoder_forward.1} parent=1 // pred_check_branch
      %17 = sbr.rel (0) target = $region5
    $region4: #{_encoder_forward.1} parent=1 // pred_region
      %s19 = ssub.s32 128, 128
      %20 = vsyncadd [#allocation3], %s19
      %s22 = sshll.u32 [#allocation2], 4
      %s23 = int_to_ptr.vmem [resolvable:$true] %s22
      %25 = dma.hbm_to_vmem [thread:$0]  %s0, 128, %s23, [#allocation3]
    $region5: #{_encoder_forward.1} parent=1 // pred_fallthru
      _
    // Predicated region
    $region6: #{_encoder_forward.1} parent=1 // pred_check
      _
    $region7: #{_encoder_forward.1} parent=1 // pred_check_branch
      %27 = sbr.rel (0) target = $region9
    $region8: #{_encoder_forward.1} parent=1 // pred_region
      _
    $region9: #{_encoder_forward.1} parent=1 // pred_fallthru
      _
    // Predicated region
    $region10: #{_encoder_forward.1} parent=1 // pred_check
      _
    $region11: #{_encoder_forward.1} parent=1 // pred_check_branch
      %29 = sbr.rel (0) target = $region13
    $region12: #{_encoder_forward.1} parent=1 // pred_region
      _
    $region13: #{_encoder_forward.1} parent=1 // pred_fallthru
      _
    // Predicated region
    $region14: #{_encoder_forward.1} parent=1 // pred_check
      _
    $region15: #{_encoder_forward.1} parent=1 // pred_check_branch
      %31 = sbr.rel (0) target = $region17
    $region16: #{_encoder_forward.1} parent=1 // pred_region
      %s33 = ssub.s32 1024, 1024
      %34 = vsyncadd [#allocation5], %s33
      %s35 = sshll.u32 [#allocation4], 4
      %s36 = int_to_ptr.vmem [resolvable:$true] %s35
      %41 = dma.hbm_to_vmem [thread:$0]  %s3, 1024, %s36, [#allocation5], 64, 64, 4
    $region17: #{_encoder_forward.1} parent=1 // pred_fallthru
      _
    // Predicated region
    $region18: #{_encoder_forward.1} parent=1 // pred_check
      _
    $region19: #{_encoder_forward.1} parent=1 // pred_check_branch
      %43 = sbr.rel (0) target = $region21
    $region20: #{_encoder_forward.1} parent=1 // pred_region
      _
    $region21: #{_encoder_forward.1} parent=1 // pred_fallthru
      _
    // Predicated region
    $region22: #{_encoder_forward.1} parent=1 // pred_check
      _
    $region23: #{_encoder_forward.1} parent=1 // pred_check_branch
      %45 = sbr.rel (0) target = $region25
    $region24: #{_encoder_forward.1} parent=1 // pred_region
      %s47 = ssub.s32 1024, 1024
      %48 = vsyncadd [#allocation5], %s47
      %s49 = sshll.u32 [#allocation6], 4
      %s50 = int_to_ptr.vmem [resolvable:$true] %s49
      %55 = dma.hbm_to_vmem [thread:$0]  %s5, 1024, %s50, [#allocation5], 64, 64, 4
    $region25: #{_encoder_forward.1} parent=1 // pred_fallthru
      _
    // Predicated region
    $region26: #{_encoder_forward.1} parent=1 // pred_check
      _
    $region27: #{_encoder_forward.1} parent=1 // pred_check_branch
      %57 = sbr.rel (0) target = $region29
    $region28: #{_encoder_forward.1} parent=1 // pred_region
      %s59 = ssub.s32 16, 16
      %60 = vsyncadd [#allocation8], %s59
      %s62 = sshll.u32 [#allocation7], 4
      %s63 = int_to_ptr.vmem [resolvable:$true] %s62
      %65 = dma.hbm_to_vmem [thread:$0]  %s6, 16, %s63, [#allocation8]
    $region29: #{_encoder_forward.1} parent=1 // pred_fallthru
      _
    // Predicated region
    $region30: #{_encoder_forward.1} parent=1 // pred_check
      _
    $region31: #{_encoder_forward.1} parent=1 // pred_check_branch
      %67 = sbr.rel (0) target = $region33
    $region32: #{_encoder_forward.1} parent=1 // pred_region
      %s69 = ssub.s32 16, 16
      %70 = vsyncadd [#allocation8], %s69
      %s72 = sshll.u32 [#allocation9], 4
      %s73 = int_to_ptr.vmem [resolvable:$true] %s72
      %75 = dma.hbm_to_vmem [thread:$0]  %s7, 16, %s73, [#allocation8]
    $region33: #{_encoder_forward.1} parent=1 // pred_fallthru
      _
    // Predicated region
    $region34: #{_encoder_forward.1} parent=1 // pred_check
      _
    $region35: #{_encoder_forward.1} parent=1 // pred_check_branch
      %77 = sbr.rel (0) target = $region37
    $region36: #{_encoder_forward.1} parent=1 // pred_region
      %78 = dma.done [#allocation3], 128
    $region37: #{_encoder_forward.1} parent=1 // pred_fallthru
      _
    // Predicated region
    $region38: #{_encoder_forward.1} parent=1 // pred_check
      _
    $region39: #{_encoder_forward.1} parent=1 // pred_check_branch
      %80 = sbr.rel (0) target = $region41
    $region40: #{_encoder_forward.1} parent=1 // pred_region
      %81 = dma.done [#allocation5], 1024
    $region41: #{_encoder_forward.1} parent=1 // pred_fallthru
      _
    // Predicated region
    $region42: #{_encoder_forward.1} parent=1 // pred_check
      _
    $region43: #{_encoder_forward.1} parent=1 // pred_check_branch
      %83 = sbr.rel (0) target = $region45
    $region44: #{_encoder_forward.1} parent=1 // pred_region
      %84 = dma.done [#allocation5], 1024
    $region45: #{_encoder_forward.1} parent=1 // pred_fallthru
      _
    // Predicated region
    $region46: #{_encoder_forward.1} parent=1 // pred_check
      _
    $region47: #{_encoder_forward.1} parent=1 // pred_check_branch
      %86 = sbr.rel (0) target = $region49
    $region48: #{_encoder_forward.1} parent=1 // pred_region
      %87 = dma.done [#allocation8], 16
    $region49: #{_encoder_forward.1} parent=1 // pred_fallthru
      _
    // Predicated region
    $region50: #{_encoder_forward.1} parent=1 // pred_check
      _
    $region51: #{_encoder_forward.1} parent=1 // pred_check_branch
      %89 = sbr.rel (0) target = $region53
    $region52: #{_encoder_forward.1} parent=1 // pred_region
      %90 = dma.done [#allocation8], 16
    $region53: #{_encoder_forward.1} parent=1 // pred_fallthru
      _
    %v92 = vld [vmem:[#allocation2] sm:$0xff]
    %v93 = vpack.c.bf16 %v92, %v92
    %v94 = vld [vmem:[%s1] sm:$0xf]
    %v95 = vld [vmem:[%s1 + $0x4] sm:$0xf]
    %v96 = vld [vmem:[%s1 + $0x8] sm:$0xf]
    %v97 = vld [vmem:[%s1 + $0xc] sm:$0xf]
    %v98 = vld [vmem:[%s2] sm:$0x1]
    %v100 = vlaneseq
    %v101 = vshrl.u32 %v100, 7
    %v102 = vsub.s32 0, %v101
    %v103 = vrot.slane %v98, %v102
    %v109 = vunpack.c.l.b16 %v94
    %v110 = vunpack.c.l.b16 %v95
    %v111 = vunpack.c.l.b16 %v96
    %v112 = vunpack.c.l.b16 %v97
    %v113 = vpack.c.b16 %v110, %v109
    %v114 = vpack.c.b16 %v112, %v111
    %vm117 = vcmask 261120
    %v119 = vsel %vm117, %v93, 0
    %121 = vmatprep.subr.bf16.mxu0 0
    %122 = vmatpush1.bf16.msra.mxu0 %v113
    %123 = vmatprep.subr.bf16.mxu0 0
    %124 = vmatpush1.bf16.msra.mxu0 %v114
    %125 = vmatprep.subr.bf16.mxu0 0
    %126 = vmatpush1.bf16.msra.mxu0 0
    %127 = vmatprep.subr.bf16.mxu0 0
    %128 = vmatpush1.bf16.msra.mxu0 0
    %129 = vmatprep.subr.bf16.mxu0 0
    %130 = vmatpush1.bf16.msra.mxu0 0
    %131 = vmatprep.subr.bf16.mxu0 0
    %132 = vmatpush1.bf16.msra.mxu0 0
    %133 = vmatprep.subr.bf16.mxu0 0
    %134 = vmatpush1.bf16.msra.mxu0 0
    %135 = vmatprep.subr.bf16.mxu0 0
    %136 = vmatpush1.bf16.msra.mxu0 0
    %137 = vmatprep.subr.bf16.mxu0 0
    %138 = vmatpush1.bf16.msra.mxu0 0
    %139 = vmatprep.subr.bf16.mxu0 0
    %140 = vmatpush1.bf16.msra.mxu0 0
    %141 = vmatprep.subr.bf16.mxu0 0
    %142 = vmatpush1.bf16.msra.mxu0 0
    %143 = vmatprep.subr.bf16.mxu0 0
    %144 = vmatpush1.bf16.msra.mxu0 0
    %145 = vmatprep.subr.bf16.mxu0 0
    %146 = vmatpush1.bf16.msra.mxu0 0
    %147 = vmatprep.subr.bf16.mxu0 0
    %148 = vmatpush1.bf16.msra.mxu0 0
    %149 = vmatprep.subr.bf16.mxu0 0
    %150 = vmatpush1.bf16.msra.mxu0 0
    %151 = vmatprep.subr.bf16.mxu0 0
    %152 = vmatpush1.bf16.msra.mxu0 0
    %153 = vmatprep.mubr.bf16.mxu0 0
    %154 = vmatmul.mubr.bf16.gmra.mrb[0].mxu0 %v119
    %v155 = vpop.f32.mrb[0].mxu0
    %v156 = vadd.f32 %v103, %v155
    %v157 = vpop.f32.mrb[0].mxu0
    %v158 = vpop.f32.mrb[0].mxu0
    %v159 = vpop.f32.mrb[0].mxu0
    %160 = vdwg.mxu0
    %v161 = vmax.f32 %v156, 0.0
    %v162 = vpack.c.bf16 %v161, %v161
    %v163 = vld [vmem:[#allocation4] sm:$0xf]
    %v164 = vld [vmem:[#allocation4 + $0x4] sm:$0xf]
    %v165 = vld [vmem:[#allocation4 + $0x8] sm:$0xf]
    %v166 = vld [vmem:[#allocation4 + $0xc] sm:$0xf]
    %v167 = vld [vmem:[#allocation4 + $0x10] sm:$0xf]
    %v168 = vld [vmem:[#allocation4 + $0x14] sm:$0xf]
    %v169 = vld [vmem:[#allocation4 + $0x18] sm:$0xf]
    %v170 = vld [vmem:[#allocation4 + $0x1c] sm:$0xf]
    %v171 = vld [vmem:[#allocation4 + $0x20] sm:$0xf]
    %v172 = vld [vmem:[#allocation4 + $0x24] sm:$0xf]
    %v173 = vld [vmem:[#allocation4 + $0x28] sm:$0xf]
    %v174 = vld [vmem:[#allocation4 + $0x2c] sm:$0xf]
    %v175 = vld [vmem:[#allocation4 + $0x30] sm:$0xf]
    %v176 = vld [vmem:[#allocation4 + $0x34] sm:$0xf]
    %v177 = vld [vmem:[#allocation4 + $0x38] sm:$0xf]
    %v178 = vld [vmem:[#allocation4 + $0x3c] sm:$0xf]
    %v179 = vld [vmem:[%s4] sm:$0x1]
    %v181 = vlaneseq
    %v182 = vshrl.u32 %v181, 7
    %v183 = vsub.s32 0, %v182
    %v184 = vrot.slane %v179, %v183
    %v202 = vunpack.c.l.b16 %v163
    %v203 = vunpack.c.l.b16 %v164
    %v204 = vunpack.c.l.b16 %v165
    %v205 = vunpack.c.l.b16 %v166
    %v206 = vunpack.c.l.b16 %v167
    %v207 = vunpack.c.l.b16 %v168
    %v208 = vunpack.c.l.b16 %v169
    %v209 = vunpack.c.l.b16 %v170
    %v210 = vunpack.c.l.b16 %v171
    %v211 = vunpack.c.l.b16 %v172
    %v212 = vunpack.c.l.b16 %v173
    %v213 = vunpack.c.l.b16 %v174
    %v214 = vunpack.c.l.b16 %v175
    %v215 = vunpack.c.l.b16 %v176
    %v216 = vunpack.c.l.b16 %v177
    %v217 = vunpack.c.l.b16 %v178
    %v218 = vpack.c.b16 %v203, %v202
    %v219 = vpack.c.b16 %v205, %v204
    %v220 = vpack.c.b16 %v207, %v206
    %v221 = vpack.c.b16 %v209, %v208
    %v222 = vpack.c.b16 %v211, %v210
    %v223 = vpack.c.b16 %v213, %v212
    %v224 = vpack.c.b16 %v215, %v214
    %v225 = vpack.c.b16 %v217, %v216
    %234 = vmatprep.subr.bf16.mxu0 0
    %235 = vmatpush1.bf16.msra.mxu0 %v218
    %236 = vmatprep.subr.bf16.mxu0 0
    %237 = vmatpush1.bf16.msra.mxu0 %v219
    %238 = vmatprep.subr.bf16.mxu0 0
    %239 = vmatpush1.bf16.msra.mxu0 %v220
    %240 = vmatprep.subr.bf16.mxu0 0
    %241 = vmatpush1.bf16.msra.mxu0 %v221
    %242 = vmatprep.subr.bf16.mxu0 0
    %243 = vmatpush1.bf16.msra.mxu0 %v222
    %244 = vmatprep.subr.bf16.mxu0 0
    %245 = vmatpush1.bf16.msra.mxu0 %v223
    %246 = vmatprep.subr.bf16.mxu0 0
    %247 = vmatpush1.bf16.msra.mxu0 %v224
    %248 = vmatprep.subr.bf16.mxu0 0
    %249 = vmatpush1.bf16.msra.mxu0 %v225
    %250 = vmatprep.subr.bf16.mxu0 0
    %251 = vmatpush1.bf16.msra.mxu0 0
    %252 = vmatprep.subr.bf16.mxu0 0
    %253 = vmatpush1.bf16.msra.mxu0 0
    %254 = vmatprep.subr.bf16.mxu0 0
    %255 = vmatpush1.bf16.msra.mxu0 0
    %256 = vmatprep.subr.bf16.mxu0 0
    %257 = vmatpush1.bf16.msra.mxu0 0
    %258 = vmatprep.subr.bf16.mxu0 0
    %259 = vmatpush1.bf16.msra.mxu0 0
    %260 = vmatprep.subr.bf16.mxu0 0
    %261 = vmatpush1.bf16.msra.mxu0 0
    %262 = vmatprep.subr.bf16.mxu0 0
    %263 = vmatpush1.bf16.msra.mxu0 0
    %264 = vmatprep.subr.bf16.mxu0 0
    %265 = vmatpush1.bf16.msra.mxu0 0
    %266 = vmatprep.mubr.bf16.mxu0 0
    %267 = vmatmul.mubr.bf16.gmra.mrb[0].mxu0 %v162
    %v268 = vpop.f32.mrb[0].mxu0
    %v269 = vadd.f32 %v184, %v268
    %v270 = vpop.f32.mrb[0].mxu0
    %v271 = vpop.f32.mrb[0].mxu0
    %v272 = vpop.f32.mrb[0].mxu0
    %273 = vdwg.mxu0
    %v274 = vmax.f32 %v269, 0.0
    %v275 = vpack.c.bf16 %v274, %v274
    %v276 = vld [vmem:[#allocation6] sm:$0xf]
    %v277 = vld [vmem:[#allocation6 + $0x4] sm:$0xf]
    %v278 = vld [vmem:[#allocation6 + $0x8] sm:$0xf]
    %v279 = vld [vmem:[#allocation6 + $0xc] sm:$0xf]
    %v280 = vld [vmem:[#allocation6 + $0x10] sm:$0xf]
    %v281 = vld [vmem:[#allocation6 + $0x14] sm:$0xf]
    %v282 = vld [vmem:[#allocation6 + $0x18] sm:$0xf]
    %v283 = vld [vmem:[#allocation6 + $0x1c] sm:$0xf]
    %v284 = vld [vmem:[#allocation6 + $0x20] sm:$0xf]
    %v285 = vld [vmem:[#allocation6 + $0x24] sm:$0xf]
    %v286 = vld [vmem:[#allocation6 + $0x28] sm:$0xf]
    %v287 = vld [vmem:[#allocation6 + $0x2c] sm:$0xf]
    %v288 = vld [vmem:[#allocation6 + $0x30] sm:$0xf]
    %v289 = vld [vmem:[#allocation6 + $0x34] sm:$0xf]
    %v290 = vld [vmem:[#allocation6 + $0x38] sm:$0xf]
    %v291 = vld [vmem:[#allocation6 + $0x3c] sm:$0xf]
    %v292 = vld [vmem:[#allocation7] sm:$0x1]
    %v294 = vlaneseq
    %v295 = vshrl.u32 %v294, 7
    %v296 = vsub.s32 0, %v295
    %v297 = vrot.slane %v292, %v296
    %v315 = vunpack.c.l.b16 %v276
    %v316 = vunpack.c.l.b16 %v277
    %v317 = vunpack.c.l.b16 %v278
    %v318 = vunpack.c.l.b16 %v279
    %v319 = vunpack.c.l.b16 %v280
    %v320 = vunpack.c.l.b16 %v281
    %v321 = vunpack.c.l.b16 %v282
    %v322 = vunpack.c.l.b16 %v283
    %v323 = vunpack.c.l.b16 %v284
    %v324 = vunpack.c.l.b16 %v285
    %v325 = vunpack.c.l.b16 %v286
    %v326 = vunpack.c.l.b16 %v287
    %v327 = vunpack.c.l.b16 %v288
    %v328 = vunpack.c.l.b16 %v289
    %v329 = vunpack.c.l.b16 %v290
    %v330 = vunpack.c.l.b16 %v291
    %v331 = vpack.c.b16 %v316, %v315
    %v332 = vpack.c.b16 %v318, %v317
    %v333 = vpack.c.b16 %v320, %v319
    %v334 = vpack.c.b16 %v322, %v321
    %v335 = vpack.c.b16 %v324, %v323
    %v336 = vpack.c.b16 %v326, %v325
    %v337 = vpack.c.b16 %v328, %v327
    %v338 = vpack.c.b16 %v330, %v329
    %347 = vmatprep.subr.bf16.mxu0 0
    %348 = vmatpush1.bf16.msra.mxu0 %v331
    %349 = vmatprep.subr.bf16.mxu0 0
    %350 = vmatpush1.bf16.msra.mxu0 %v332
    %351 = vmatprep.subr.bf16.mxu0 0
    %352 = vmatpush1.bf16.msra.mxu0 %v333
    %353 = vmatprep.subr.bf16.mxu0 0
    %354 = vmatpush1.bf16.msra.mxu0 %v334
    %355 = vmatprep.subr.bf16.mxu0 0
    %356 = vmatpush1.bf16.msra.mxu0 %v335
    %357 = vmatprep.subr.bf16.mxu0 0
    %358 = vmatpush1.bf16.msra.mxu0 %v336
    %359 = vmatprep.subr.bf16.mxu0 0
    %360 = vmatpush1.bf16.msra.mxu0 %v337
    %361 = vmatprep.subr.bf16.mxu0 0
    %362 = vmatpush1.bf16.msra.mxu0 %v338
    %363 = vmatprep.subr.bf16.mxu0 0
    %364 = vmatpush1.bf16.msra.mxu0 0
    %365 = vmatprep.subr.bf16.mxu0 0
    %366 = vmatpush1.bf16.msra.mxu0 0
    %367 = vmatprep.subr.bf16.mxu0 0
    %368 = vmatpush1.bf16.msra.mxu0 0
    %369 = vmatprep.subr.bf16.mxu0 0
    %370 = vmatpush1.bf16.msra.mxu0 0
    %371 = vmatprep.subr.bf16.mxu0 0
    %372 = vmatpush1.bf16.msra.mxu0 0
    %373 = vmatprep.subr.bf16.mxu0 0
    %374 = vmatpush1.bf16.msra.mxu0 0
    %375 = vmatprep.subr.bf16.mxu0 0
    %376 = vmatpush1.bf16.msra.mxu0 0
    %377 = vmatprep.subr.bf16.mxu0 0
    %378 = vmatpush1.bf16.msra.mxu0 0
    %379 = vmatprep.mubr.bf16.mxu0 0
    %380 = vmatmul.mubr.bf16.gmra.mrb[0].mxu0 %v275
    %v381 = vpop.f32.mrb[0].mxu0
    %v382 = vadd.f32 %v297, %v381
    %v383 = vpop.f32.mrb[0].mxu0
    %v384 = vpop.f32.mrb[0].mxu0
    %v385 = vpop.f32.mrb[0].mxu0
    %386 = vdwg.mxu0
    %v387 = vmax.f32 %v382, 0.0
    %v388 = vand.u32 2147483647, %v382
    %v389 = vsub.f32 0.0, %v388
    %v390 = vmul.f32 %v389, 1.442695
    %v391 = vpow.pop %v390
    %v392 = vadd.f32 %v391, 1.0
    %v393 = vlog2.pop %v392
    %v394 = vmul.f32 %v393, 0.6931472
    %v395 = vmul.f32 -0.5, %v391
    %v396 = vadd.f32 %v395, 1.0
    %v397 = vmul.f32 %v396, %v391
    %v398 = vand.u32 2147483647, %v391
    %vm399 = vcmp.lt.f32.partialorder %v398, 0.0004427343
    %v400 = vsel %vm399, %v397, %v394
    %v401 = vadd.f32 %v387, %v400
    %v402 = vld [vmem:[#allocation9] sm:$0x1]
    %vm403 = vcmp.gt.f32.partialorder %v402, 0.0
    %v404 = vsel %vm403, 1, 0
    %v405 = vlaneseq
    %v406 = vshrl.u32 %v405, 7
    %v407 = vsub.s32 0, %v406
    %v408 = vrot.slane %v404, %v407
    %vm409 = vcmp.eq.s32.totalorder %v408, 1
    %v410 = vsel %vm409, %v382, %v401
    %411 = vst [vmem:[%s8] sm:$0xff] %v410
    // Predicated region
    $region54: #{_encoder_forward.1} parent=1 // pred_check
      _
    $region55: #{_encoder_forward.1} parent=1 // pred_check_branch
      %413 = sbr.rel (0) target = $region57
    $region56: #{_encoder_forward.1} parent=1 // pred_region
      _
    $region57: #{_encoder_forward.1} parent=1 // pred_fallthru
      _
    // Predicated region
    $region58: #{_encoder_forward.1} parent=1 // pred_check
      _
    $region59: #{_encoder_forward.1} parent=1 // pred_check_branch
      %415 = sbr.rel (0) target = $region61
    $region60: #{_encoder_forward.1} parent=1 // pred_region
      _
    $region61: #{_encoder_forward.1} parent=1 // pred_fallthru
      _
    %416 = vsyncpa [#allocation3], 1
    %417 = vsyncpa [#allocation5], 1
    %418 = vsyncpa [#allocation8], 1

</llo_original>
